<compile_context>
chip_gen: v6e
topology: v6e:2x2x1
jax: 0.10.0
libtpu: 0.0.40
codegen_flags: <defaults>
</compile_context>

<pallas_src>
import math

import jax
import jax.numpy as jnp
from jax.experimental import pallas as pl
from jax.experimental.pallas import tpu as pltpu


_LANE_CANDIDATES = (2048, 1024, 512, 256)   # must be multiples of 256
_FALLBACK_LANES = 256


def _nominal_poly_kernel(x_ref, o_ref):
    # x_ref / o_ref: (TM, L) VMEM tiles holding the interleaved pair stream.
    # Even lanes hold x0 of a pair, odd lanes hold x1 of the same pair
    # (L is even, so parity is preserved across rows).
    x = x_ref[...]
    if x.dtype != jnp.float32:
        x = x.astype(jnp.float32)           # bf16-safe cube
    lanes = x.shape[-1]

    # Bidirectional neighbor exchange: even lanes need their right neighbor
    # (x1), odd lanes need their left neighbor (x0).  Two XLU lane rotations
    # are the minimum for a two-direction exchange; both hide under HBM.
    nxt = pltpu.roll(x, shift=lanes - 1, axis=1)   # nxt[:, j] = x[:, (j+1) % L]
    prv = pltpu.roll(x, shift=1, axis=1)           # prv[:, j] = x[:, (j-1) % L]

    # Parity mask from a single-row iota (broadcast inside the select).
    lane = jax.lax.broadcasted_iota(jnp.int32, (1, lanes), 1)
    is_even = (lane & 1) == 0

    # Even-lane output: x1 of the pair.
    # Odd-lane output:  x0**3/3 - (x0 + x1)   (plain VPU math, no reductions).
    x2_new = prv * prv * prv * (1.0 / 3.0) - (prv + x)
    out = jnp.where(is_even, nxt, x2_new)

    # Single unmasked full-width store of the assembled tile.
    o_ref[...] = out.astype(o_ref.dtype)


def _pick_block_bytes():
    """Target f32 compute footprint per block, per chip generation."""
    kind = ""
    try:
        kind = jax.devices()[0].device_kind.lower()
    except Exception:
        pass
    if "v5" in kind and ("lite" in kind or "v5e" in kind):
        return 2 << 20       # v5e: ~0.82 TB/s, 2 MiB blocks already ~roofline
    if "v6" in kind or "7" in kind:
        return 4 << 20       # v6e / v7x: bigger blocks amortize per-step cost
    return 2 << 20           # unknown chip: conservative


def _round_up(n, m):
    return ((n + m - 1) // m) * m


def nominal_polynomial_update(x, *, lanes=None, block_bytes=None):
    """x: (..., 2) float array -> (..., 2) array with the polynomial update."""
    orig_shape = x.shape
    if orig_shape[-1] != 2:
        raise ValueError("state dimension must be 2")
    dtype = x.dtype
    itemsize = jnp.dtype(dtype).itemsize
    total = math.prod(orig_shape)

    # Free row-major flatten: interleaved [x0, x1, x0, x1, ...].
    flat = x.reshape(-1)

    # Lane width: largest candidate that divides the flat length -> zero-copy
    # path (no pad, no output slice, no extra HBM traffic).
    if lanes is None:
        lanes = next((c for c in _LANE_CANDIDATES if total % c == 0),
                     _FALLBACK_LANES)
    if lanes % 256 != 0:
        raise ValueError("lanes must be a multiple of 256 (even + lane-dense)")

    padded_total = _round_up(total, lanes)
    if padded_total != total:
        # Ragged fallback: pad + final slice cost one extra HBM round trip
        # each way.  Kept only for totals no lane candidate divides.
        # TODO(synk): zero-copy ragged path via pl.ANY input + manual DMA of
        # the tail block with a masked store instead of pad + slice.
        flat = jnp.pad(flat, (0, padded_total - total))

    m = padded_total // lanes
    x2d = flat.reshape(m, lanes)

    # Row tiling: sized off the f32 compute footprint (intermediates are f32
    # regardless of input dtype) so VMEM stays bounded; rows kept sublane-legal
    # for packed dtypes (8 f32 / 16 bf16 / 32 int8).
    if block_bytes is None:
        block_bytes = _pick_block_bytes()
    sub = 8 * max(1, 4 // itemsize)
    tile_rows = max(sub, (block_bytes // (lanes * 4)) // sub * sub)

    tm = min(tile_rows, m)
    # Keep at least two grid steps when the slab is big enough so the
    # "parallel" row axis can be sharded across both TensorCores on v7x
    # (harmless on single-TC v5e/v6e).
    if m > sub and pl.cdiv(m, tm) < 2:
        tm = min(m, max(sub, _round_up(pl.cdiv(m, 2), sub)))
    grid = (pl.cdiv(m, tm),)

    # VMEM budget: 2x double-buffered in/out blocks (input dtype) plus the
    # in-kernel f32 intermediates (x, nxt, prv, x2, out) with headroom.
    io_bytes = tm * lanes * itemsize
    comp_bytes = tm * lanes * 4
    vmem_limit = int(min(56 << 20, 4 * io_bytes + 6 * comp_bytes + (4 << 20)))

    cost = pl.CostEstimate(
        flops=6 * padded_total,
        transcendentals=0,
        bytes_accessed=2 * padded_total * itemsize,
    )

    out2d = pl.pallas_call(
        _nominal_poly_kernel,
        out_shape=jax.ShapeDtypeStruct((m, lanes), dtype),
        grid_spec=pltpu.PrefetchScalarGridSpec(
            num_scalar_prefetch=0,
            grid=grid,
            in_specs=[pl.BlockSpec((tm, lanes), lambda i: (i, 0))],
            out_specs=pl.BlockSpec((tm, lanes), lambda i: (i, 0)),
        ),
        compiler_params=pltpu.CompilerParams(
            dimension_semantics=("parallel",),
            vmem_limit_bytes=vmem_limit,
        ),
        cost_estimate=cost,
    )(x2d)

    out_flat = out2d.reshape(-1)
    if padded_total != total:
        out_flat = out_flat[:total]
    return out_flat.reshape(orig_shape)


def _reference(x):
    xf = x.astype(jnp.float32)
    x1 = xf[..., 1]
    x2 = xf[..., 0] ** 3 / 3.0 - xf.sum(axis=-1)
    return jnp.stack([x1, x2], axis=-1)


if __name__ == "__main__":
    key = jax.random.PRNGKey(0)
    k1, k2, k3, k4 = jax.random.split(key, 4)

    # 1) Typical small batch of 2-D states: zero-copy path, single block.
    x_small = jax.random.normal(k1, (4, 32, 2), dtype=jnp.float32)
    out_small = jax.block_until_ready(nominal_polynomial_update(x_small))
    ref_small = _reference(x_small)
    assert out_small.shape == ref_small.shape and out_small.dtype == jnp.float32
    assert jnp.allclose(out_small, ref_small, atol=1e-5, rtol=1e-5), \
        "mismatch vs reference (small case)"

    # 2) Zero-copy path with a >=2-step grid (exercises the megacore clamp).
    x_med = jax.random.normal(k2, (16, 1024, 2), dtype=jnp.float32)
    out_med = jax.block_until_ready(nominal_polynomial_update(x_med))
    ref_med = _reference(x_med)
    assert jnp.allclose(out_med, ref_med, atol=1e-5, rtol=1e-5), \
        "mismatch vs reference (multi-block case)"

    # 3) Ragged total (no lane candidate divides): pad/slice fallback plus a
    #    partially out-of-bounds final block.
    x_odd = jax.random.normal(k3, (3, 700, 2), dtype=jnp.float32)
    out_odd = jax.block_until_ready(nominal_polynomial_update(x_odd))
    ref_odd = _reference(x_odd)
    assert out_odd.shape == ref_odd.shape
    assert jnp.allclose(out_odd, ref_odd, atol=1e-5, rtol=1e-5), \
        "mismatch vs reference (ragged / padded case)"

    # 4) bf16 inputs: exercises the dtype-aware tiling and in-kernel f32 math.
    x_bf16 = jax.random.normal(k4, (8, 16, 2), dtype=jnp.bfloat16)
    out_bf16 = jax.block_until_ready(nominal_polynomial_update(x_bf16))
    assert out_bf16.dtype == jnp.bfloat16
    ref_bf16 = _reference(x_bf16)
    assert jnp.allclose(out_bf16.astype(jnp.float32), ref_bf16,
                        atol=1e-1, rtol=5e-2), \
        "mismatch vs reference (bf16 case)"

    print("KERNEL_OK")
</pallas_src>

<mosaic_0001>
module attributes {stable_mosaic.version = 11 : i64} {
  func.func @_nominal_poly_kernel(%arg0: i32, %arg1: memref<1x256xf32, #tpu.memory_space<vmem>>, %arg2: memref<1x256xf32, #tpu.memory_space<vmem>>) attributes {dimension_semantics = [#tpu.dimension_semantics<parallel>], iteration_bounds = array<i64: 1>, scalar_prefetch = 0 : i64, scratch_operands = 0 : i64, tpu.core_type = #tpu.core_type<tc>, window_params = [{transform_indices = @transform_0, window_bounds = array<i64: 1, 256>}, {transform_indices = @transform_1, window_bounds = array<i64: 1, 256>}]} {
    %c0 = arith.constant 0 : index
    %c0_0 = arith.constant 0 : index
    %0 = vector.load %arg1[%c0, %c0_0] : memref<1x256xf32, #tpu.memory_space<vmem>>, vector<1x256xf32>
    %c255_i32 = arith.constant 255 : i32
    %1 = tpu.dynamic_rotate %0 by %c255_i32 dim 1 : vector<1x256xf32>, i32 -> vector<1x256xf32>
    %c1_i32 = arith.constant 1 : i32
    %2 = tpu.dynamic_rotate %0 by %c1_i32 dim 1 : vector<1x256xf32>, i32 -> vector<1x256xf32>
    %3 = tpu.iota {dimensions = array<i32: 1>} : vector<1x256xi32>
    %c1_i32_1 = arith.constant 1 : i32
    %4 = vector.broadcast %c1_i32_1 : i32 to vector<1x256xi32>
    %5 = arith.andi %3, %4 : vector<1x256xi32>
    %c0_i32 = arith.constant 0 : i32
    %6 = vector.broadcast %c0_i32 : i32 to vector<1x256xi32>
    %7 = arith.cmpi eq, %5, %6 : vector<1x256xi32>
    %8 = arith.mulf %2, %2 : vector<1x256xf32>
    %9 = arith.mulf %8, %2 : vector<1x256xf32>
    %cst = arith.constant 0.333333343 : f32
    %10 = vector.broadcast %cst : f32 to vector<1x256xf32>
    %11 = arith.mulf %9, %10 : vector<1x256xf32>
    %12 = arith.addf %2, %0 : vector<1x256xf32>
    %13 = arith.subf %11, %12 : vector<1x256xf32>
    %14 = arith.select %7, %1, %13 : vector<1x256xi1>, vector<1x256xf32>
    %c0_2 = arith.constant 0 : index
    %c0_3 = arith.constant 0 : index
    %15 = vector.load %arg2[%c0_2, %c0_3] : memref<1x256xf32, #tpu.memory_space<vmem>>, vector<1x256xf32>
    tpu.vector_store %arg2[%c0_2, %c0_3], %14 {strides = array<i32>} : memref<1x256xf32, #tpu.memory_space<vmem>>, vector<1x256xf32>,
    return
  }
  func.func @transform_0(%arg0: i32) -> (i32, i32) {
    %c0_i32 = arith.constant 0 : i32
    %c0_i32_0 = arith.constant 0 : i32
    return %arg0, %c0_i32 : i32, i32
  }
  func.func @transform_1(%arg0: i32) -> (i32, i32) {
    %c0_i32 = arith.constant 0 : i32
    %c0_i32_0 = arith.constant 0 : i32
    return %arg0, %c0_i32 : i32, i32
  }
}

</mosaic_0001>

<llo_original>
// kernel: tpu_custom_call.1
$region0: #{tpu_custom_call.1}
  #allocation0 [shape = 'u32[]', space=smem, size = 0x4, offset = 0x4, fixed_abs, tag = 'smem constant byte address 0x4 - core index']
  #allocation1 [shape = 'u32[144,128]{1,0:T(1,128)}', space=vmem, size = 0x12000, scoped, tag = 'internal scratch']
  %s0 = inlined_call_operand.hbm [shape: f32[1,256], index: 0, kind: input, shape index: {}]
  %s1 = inlined_call_operand.hbm [shape: f32[1,256], index: 1, kind: output, shape index: {}]
  %s2 = sld [smem:[#allocation0]]
  $region18: #{tpu_custom_call.1} parent=0
    _
  %s4 = ssub.s32 1, %s2
  %s5 = scalar_select 0, %s4, %s2
  $region1: #{tpu_custom_call.1} parent=0
    #allocation2 [shape = 'u8[1024]{0}', space=vmem, size = 0x400, scoped, tag = 'input window, operand 0, single buffered']
    #allocation3 [shape = 's32[1]{0}', space=sflag, size = 0x4, scoped, tag = 'scoped memory for tpu_custom_call.1']
    #allocation4 [shape = 's32[1]{0}', space=sflag, size = 0x4, scoped, tag = 'scoped memory for tpu_custom_call.1']
    #allocation5 [shape = 'u8[1024]{0}', space=vmem, size = 0x400, scoped, tag = 'output window, operand 0, single buffered']
    %6 = vsyncpa [#allocation3], 0
    %7 = vsyncpa [#allocation4], 0
    // Predicated region
    $region2: #{tpu_custom_call.1} parent=1 // pred_check
      _
    $region3: #{tpu_custom_call.1} parent=1 // pred_check_branch
      %9 = sbr.rel (0) target = $region5
    $region4: #{tpu_custom_call.1} parent=1 // pred_region
      %s11 = ssub.s32 32, 32
      %12 = vsyncadd [#allocation3], %s11
      %s14 = sshll.u32 [#allocation2], 4
      %s15 = int_to_ptr.vmem [resolvable:$true] %s14
      %17 = dma.hbm_to_vmem [thread:$0]  %s0, 32, %s15, [#allocation3]
    $region5: #{tpu_custom_call.1} parent=1 // pred_fallthru
      _
    // Predicated region
    $region6: #{tpu_custom_call.1} parent=1 // pred_check
      _
    $region7: #{tpu_custom_call.1} parent=1 // pred_check_branch
      %19 = sbr.rel (0) target = $region9
    $region8: #{tpu_custom_call.1} parent=1 // pred_region
      %20 = dma.done [#allocation3], 32
    $region9: #{tpu_custom_call.1} parent=1 // pred_fallthru
      _
    %v21 = vld [vmem:[#allocation2] sm:$0x3]
    %v23 = vlaneseq
    %v24 = vshrl.u32 %v23, 7
    %v25 = vsub.s32 0, %v24
    %v26 = vrot.slane %v21, %v25
    %v27 = vlaneseq
    %v28 = vshrl.u32 %v27, 7
    %v29 = vsub.s32 1, %v28
    %v30 = vrot.slane %v21, %v29
    %33 = vrot.lane.b32.xlu0 %v26, 127
    %v34 = vpop.permute.xlu0 %33
    %35 = vrot.lane.b32.xlu0 %v30, 127
    %v36 = vpop.permute.xlu0 %35
    %v37 = vlaneseq
    %v38 = vand.u32 %v37, 127
    %vm39 = vcmp.lt.s32.totalorder %v38, 127
    %v40 = vsel %vm39, %v34, %v36
    %v41 = vsel %vm39, %v36, %v34
    %42 = vrot.lane.b32.xlu0 %v26, 1
    %v43 = vpop.permute.xlu0 %42
    %44 = vrot.lane.b32.xlu0 %v30, 1
    %v45 = vpop.permute.xlu0 %44
    %vm46 = vcmp.lt.s32.totalorder %v38, 1
    %v47 = vsel %vm46, %v43, %v45
    %v48 = vsel %vm46, %v45, %v43
    %v49 = vadd.s32 %v38, 128
    %v50 = vand.u32 %v38, 1
    %v51 = vand.u32 %v49, 1
    %vm52 = vcmp.eq.s32.totalorder %v50, 0
    %vm53 = vcmp.eq.s32.totalorder %v51, 0
    %v54 = vmul.f32 %v48, %v48
    %v55 = vmul.f32 %v47, %v47
    %v56 = vmul.f32 %v54, %v48
    %v57 = vmul.f32 %v55, %v47
    %v58 = vmul.f32 %v56, 0.33333334
    %v59 = vmul.f32 %v57, 0.33333334
    %v60 = vadd.f32 %v48, %v26
    %v61 = vadd.f32 %v47, %v30
    %v62 = vsub.f32 %v58, %v60
    %v63 = vsub.f32 %v59, %v61
    %v64 = vsel %vm52, %v40, %v62
    %v65 = vsel %vm53, %v41, %v63
    %v68 = vcombine.low %v64, %v65
    %v70 = vunpack.c.l.s4 1966171168
    %v71 = vunpack.c.0.s8 %v70
    %v72 = vlaneseq
    %v73 = vshrl.u32 %v72, 7
    %v74 = vsub.s32 %v71, %v73
    %v75 = vrot.slane %v68, %v74
    %v77 = vunpack.c.l.s4 1966171168
    %v78 = vunpack.c.0.s8 %v77
    %v79 = vlaneseq
    %v80 = vshrl.u32 %v79, 7
    %v81 = vsub.s32 %v78, %v80
    %v82 = vrot.slane %v75, %v81
    %v84 = vlaneseq
    %vm85 = vcmp.ge.s32.totalorder %v84, 0
    %vm86 = vcmp.lt.s32.totalorder %v84, 256
    %vm87 = vmand %vm85, %vm86
    %88 = vst.msk [vmem:[#allocation5] sm:$0x3] %vm87, %v82
    // Predicated region
    $region10: #{tpu_custom_call.1} parent=1 // pred_check
      _
    $region11: #{tpu_custom_call.1} parent=1 // pred_check_branch
      %90 = sbr.rel (0) target = $region13
    $region12: #{tpu_custom_call.1} parent=1 // pred_region
      %s92 = ssub.s32 32, 32
      %93 = vsyncadd [#allocation4], %s92
      %s95 = sshll.u32 [#allocation5], 4
      %s96 = int_to_ptr.vmem [resolvable:$true] %s95
      %98 = dma.vmem_to_hbm [thread:$0]  %s96, 32, %s1, [#allocation4]
    $region13: #{tpu_custom_call.1} parent=1 // pred_fallthru
      _
    // Predicated region
    $region14: #{tpu_custom_call.1} parent=1 // pred_check
      _
    $region15: #{tpu_custom_call.1} parent=1 // pred_check_branch
      %100 = sbr.rel (0) target = $region17
    $region16: #{tpu_custom_call.1} parent=1 // pred_region
      %101 = dma.done [#allocation4], 32
    $region17: #{tpu_custom_call.1} parent=1 // pred_fallthru
      _
    %102 = vsyncpa [#allocation3], 1
    %103 = vsyncpa [#allocation4], 1

</llo_original>
